<compile_context>
chip_gen: v5e
topology: v5e:2x2
jax: 0.10.0
libtpu: 0.0.40
codegen_flags: <defaults>
</compile_context>

<pallas_src>
import functools

import jax
import jax.numpy as jnp
from jax.experimental import pallas as pl
from jax.experimental.pallas import tpu as pltpu

_BLOCK_BUDGET = 4 * 1024 * 1024          # bytes per block (in+out double-buffered ~16 MiB)
_VMEM_LIMIT = 32 * 1024 * 1024           # scoped VMEM; safe on v5e/v6e/v7x


# --------------------------------------------------------------------------
# Mask parameter draws (shared by kernels and the pure-JAX reference)
# --------------------------------------------------------------------------
def _draw_mask_params(key, axis_size, mask_param):
    """torchaudio.functional.mask_along_axis draw (p=1.0, fill=0), clamped to the axis."""
    k_len, k_start = jax.random.split(key)
    value = jax.random.uniform(k_len) * mask_param
    min_value = jax.random.uniform(k_start) * (axis_size - value)
    mask_start = jnp.clip(min_value.astype(jnp.int32), 0, axis_size)
    mask_end = jnp.clip(mask_start + value.astype(jnp.int32), mask_start, axis_size)
    return mask_start, mask_end


def _mask_params(key, F, T, time_mask_param, freq_mask_param):
    k_time, k_freq = jax.random.split(key)
    t_start, t_end = _draw_mask_params(k_time, T, time_mask_param)
    f_start, f_end = _draw_mask_params(k_freq, F, freq_mask_param)
    return t_start, t_end, f_start, f_end


# --------------------------------------------------------------------------
# Streaming (full-array) kernel -- safe, non-aliased fallback
# --------------------------------------------------------------------------
def _specaug_full_kernel(params_ref, x_ref, o_ref):
    """params_ref (SMEM, int32): [t_start, t_end, f_start, f_end]."""
    t_start = params_ref[0]
    t_end = params_ref[1]
    f_start = params_ref[2]
    f_end = params_ref[3]

    _, fF, tT = x_ref.shape
    f0 = pl.program_id(1) * fF
    t0 = pl.program_id(2) * tT

    t_idx = jax.lax.broadcasted_iota(jnp.int32, (1, 1, tT), 2) + t0
    f_idx = jax.lax.broadcasted_iota(jnp.int32, (1, fF, 1), 1) + f0
    t_keep = (t_idx < t_start) | (t_idx >= t_end)      # (1, 1, tT)
    f_keep = (f_idx < f_start) | (f_idx >= f_end)      # (1, fF, 1)
    keep = t_keep & f_keep                              # (1, fF, tT)

    # Single select: exact masked_fill semantics (zeros even over NaN/Inf).
    o_ref[...] = jnp.where(keep, x_ref[...], jnp.zeros([], o_ref.dtype))


def _choose_tiles(B, F, T, itemsize, budget=_BLOCK_BUDGET,
                  min_steps=4, min_bytes=512 * 1024):
    """Pick (bB, fF, tT): VMEM-budgeted, lane/sublane aligned, pipeline-friendly."""
    fq = max(8, 32 // max(1, itemsize))     # sublane granule per dtype (8/16/32)
    bB, fF, tT = B, F, T

    def blk_bytes():
        return bB * fF * tT * itemsize

    def nsteps():
        return pl.cdiv(B, bB) * pl.cdiv(F, fF) * pl.cdiv(T, tT)

    # (1) fewer batch rows per block
    if blk_bytes() > budget:
        bB = max(1, min(B, budget // max(1, F * T * itemsize)))
    # (2) tile freq (sublane, multiples of fq) keeping the full time axis
    #     -> long contiguous DMA runs instead of tiny lane-tiled ones
    if blk_bytes() > budget and F > fq:
        fF = min(F, max(fq, (budget // max(1, T * itemsize)) // fq * fq))
    # (3) last resort: tile time (lane) in multiples of 128
    if blk_bytes() > budget:
        tT = min(T, max(128, (budget // max(1, fF * itemsize)) // 128 * 128))
    # (4) guarantee enough grid steps for load/store overlap and both v7x cores
    if B * F * T * itemsize > min_bytes:
        while nsteps() < min_steps and bB > 1:
            bB = pl.cdiv(bB, 2)
        while nsteps() < min_steps and tT > 128:
            tT = max(128, (tT // 2) // 128 * 128)
        while nsteps() < min_steps and fF > fq:
            fF = max(fq, (fF // 2) // fq * fq)
    return bB, fF, tT


@functools.partial(jax.jit, static_argnames=("time_mask_param", "freq_mask_param"))
def spec_augment(spec, key, *, time_mask_param=80, freq_mask_param=32):
    """SpecAugment forward, streaming full pass (no in-place aliasing). spec: (B, F, T)."""
    B, F, T = spec.shape
    itemsize = jnp.dtype(spec.dtype).itemsize

    t_start, t_end, f_start, f_end = _mask_params(key, F, T, time_mask_param, freq_mask_param)
    params = jnp.stack([t_start, t_end, f_start, f_end]).astype(jnp.int32)

    bB, fF, tT = _choose_tiles(B, F, T, itemsize)
    grid = (pl.cdiv(B, bB), pl.cdiv(F, fF), pl.cdiv(T, tT))
    blk = pl.BlockSpec((bB, fF, tT), lambda b, f, t, params: (b, f, t))

    return pl.pallas_call(
        _specaug_full_kernel,
        out_shape=jax.ShapeDtypeStruct((B, F, T), spec.dtype),
        grid_spec=pltpu.PrefetchScalarGridSpec(
            num_scalar_prefetch=1, grid=grid, in_specs=[blk], out_specs=blk),
        cost_estimate=pl.CostEstimate(
            flops=0, transcendentals=0, bytes_accessed=2 * B * F * T * itemsize),
        compiler_params=pltpu.CompilerParams(
            dimension_semantics=("parallel", "parallel", "parallel"),
            vmem_limit_bytes=_VMEM_LIMIT),
    )(params, spec)


# --------------------------------------------------------------------------
# Span-only in-place kernels -- only the masked regions are DMA'd
# --------------------------------------------------------------------------
def _time_span_kernel(params_ref, x_ref, o_ref, *, tT):
    """Zero [t_start, t_end) along time for every freq row of this block."""
    t_start = params_ref[0]
    t_end = params_ref[1]
    t0 = (params_ref[4] + pl.program_id(1)) * tT        # global offset of this span tile
    t_idx = jax.lax.broadcasted_iota(jnp.int32, (1, 1, x_ref.shape[2]), 2) + t0
    keep = (t_idx < t_start) | (t_idx >= t_end)
    o_ref[...] = jnp.where(keep, x_ref[...], jnp.zeros([], o_ref.dtype))


def _freq_span_kernel(params_ref, x_ref, o_ref, *, fF):
    """Zero [f_start, f_end) along freq for every time column of this block."""
    f_start = params_ref[2]
    f_end = params_ref[3]
    f0 = (params_ref[5] + pl.program_id(2)) * fF         # global offset of this span tile
    f_idx = jax.lax.broadcasted_iota(jnp.int32, (1, x_ref.shape[1], 1), 1) + f0
    keep = (f_idx < f_start) | (f_idx >= f_end)
    o_ref[...] = jnp.where(keep, x_ref[...], jnp.zeros([], o_ref.dtype))


@functools.partial(jax.jit,
                   static_argnames=("time_mask_param", "freq_mask_param"),
                   donate_argnums=(0,))
def spec_augment_inplace(spec, key, *, time_mask_param=80, freq_mask_param=32):
    """Span-only, in-place SpecAugment. The input buffer is donated and rewritten."""
    B, F, T = spec.shape
    itemsize = jnp.dtype(spec.dtype).itemsize
    t_start, t_end, f_start, f_end = _mask_params(key, F, T, time_mask_param, freq_mask_param)

    # ---- phase 1 geometry: time span, lane-dense tiles, full F per block ----
    tT1 = T if T <= 128 else 128
    nblk_t = pl.cdiv(T, tT1)
    n_span_t = min(pl.cdiv(max(time_mask_param, 1), tT1) + 1, nblk_t)
    bB1 = max(1, min(B, _BLOCK_BUDGET // max(1, F * tT1 * itemsize)))
    t_blk0 = jnp.clip(t_start // tT1, 0, nblk_t - n_span_t)   # first time block of the window

    # ---- phase 2 geometry: freq span, sublane tiles, full T per block ----
    fq = max(8, 32 // max(1, itemsize))
    fF2 = F if F <= fq else fq
    nblk_f = pl.cdiv(F, fF2)
    n_span_f = min(pl.cdiv(max(freq_mask_param, 1), fF2) + 1, nblk_f)
    if fF2 * T * itemsize <= _BLOCK_BUDGET:
        tT2 = T
    else:
        tT2 = min(T, max(128, (_BLOCK_BUDGET // max(1, fF2 * itemsize)) // 128 * 128))
    bB2 = max(1, min(B, _BLOCK_BUDGET // max(1, fF2 * tT2 * itemsize)))
    f_blk0 = jnp.clip(f_start // fF2, 0, nblk_f - n_span_f)   # first freq block of the window

    params = jnp.stack(
        [t_start, t_end, f_start, f_end, t_blk0, f_blk0]).astype(jnp.int32)

    # ---- phase 1: rewrite only the time-masked tiles, output aliases input ----
    t_blk = pl.BlockSpec((bB1, F, tT1), lambda b, t, params: (b, 0, params[4] + t))
    out = pl.pallas_call(
        functools.partial(_time_span_kernel, tT=tT1),
        out_shape=jax.ShapeDtypeStruct((B, F, T), spec.dtype),
        grid_spec=pltpu.PrefetchScalarGridSpec(
            num_scalar_prefetch=1,
            grid=(pl.cdiv(B, bB1), n_span_t),
            in_specs=[t_blk],
            out_specs=t_blk),
        input_output_aliases={1: 0},     # operand 0 = params (prefetch), 1 = spec
        cost_estimate=pl.CostEstimate(
            flops=0, transcendentals=0,
            bytes_accessed=2 * B * F * n_span_t * tT1 * itemsize),
        compiler_params=pltpu.CompilerParams(
            dimension_semantics=("parallel", "arbitrary"),
            vmem_limit_bytes=_VMEM_LIMIT),
    )(params, spec)

    # ---- phase 2: rewrite only the freq-masked rows, output aliases phase-1 result ----
    f_blk = pl.BlockSpec((bB2, fF2, tT2), lambda b, t, f, params: (b, params[5] + f, t))
    out = pl.pallas_call(
        functools.partial(_freq_span_kernel, fF=fF2),
        out_shape=jax.ShapeDtypeStruct((B, F, T), spec.dtype),
        grid_spec=pltpu.PrefetchScalarGridSpec(
            num_scalar_prefetch=1,
            grid=(pl.cdiv(B, bB2), pl.cdiv(T, tT2), n_span_f),
            in_specs=[f_blk],
            out_specs=f_blk),
        input_output_aliases={1: 0},
        cost_estimate=pl.CostEstimate(
            flops=0, transcendentals=0,
            bytes_accessed=2 * B * n_span_f * fF2 * T * itemsize),
        compiler_params=pltpu.CompilerParams(
            dimension_semantics=("parallel", "parallel", "arbitrary"),
            vmem_limit_bytes=_VMEM_LIMIT),
    )(params, out)

    return out


# --------------------------------------------------------------------------
# Pure-JAX reference (identical parameter draws)
# --------------------------------------------------------------------------
def _reference(spec, key, *, time_mask_param=80, freq_mask_param=32):
    B, F, T = spec.shape
    t_start, t_end, f_start, f_end = _mask_params(key, F, T, time_mask_param, freq_mask_param)
    t_idx = jnp.arange(T)
    f_idx = jnp.arange(F)
    t_keep = (t_idx < t_start) | (t_idx >= t_end)
    f_keep = (f_idx < f_start) | (f_idx >= f_end)
    keep = t_keep[None, None, :] & f_keep[None, :, None]
    return jnp.where(keep, spec, jnp.zeros([], spec.dtype))


if __name__ == "__main__":
    root = jax.random.PRNGKey(0)
    k_data, k_mask, k_data2, k_mask2 = jax.random.split(root, 4)

    # --- small spectrogram (batch, freq, time): single-block grids ---
    B, F, T = 2, 64, 128
    spec = jax.random.normal(k_data, (B, F, T), dtype=jnp.float32)
    ref = _reference(spec, k_mask, time_mask_param=80, freq_mask_param=32)

    out = jax.block_until_ready(
        spec_augment(spec, k_mask, time_mask_param=80, freq_mask_param=32))
    assert out.shape == spec.shape and out.dtype == spec.dtype
    assert jnp.array_equal(out, ref), "streaming path mismatch (small)"

    out_ip = jax.block_until_ready(
        spec_augment_inplace(spec, k_mask, time_mask_param=80, freq_mask_param=32))
    assert jnp.array_equal(out_ip, ref), "in-place span path mismatch (small)"
    # NOTE: `spec` was donated to the in-place call above; do not reuse it.

    # --- larger spectrogram: multi-step tiled grid + data-dependent span tiles ---
    B2, F2, T2 = 1, 80, 2048
    spec2 = jax.random.normal(k_data2, (B2, F2, T2), dtype=jnp.float32)
    ref2 = _reference(spec2, k_mask2, time_mask_param=80, freq_mask_param=32)

    out2 = jax.block_until_ready(
        spec_augment(spec2, k_mask2, time_mask_param=80, freq_mask_param=32))
    assert jnp.array_equal(out2, ref2), "streaming path mismatch (tiled)"

    out2_ip = jax.block_until_ready(
        spec_augment_inplace(spec2, k_mask2, time_mask_param=80, freq_mask_param=32))
    assert jnp.array_equal(out2_ip, ref2), "in-place span path mismatch (tiled)"

    print("KERNEL_OK")
</pallas_src>

<mosaic_0001>
module attributes {stable_mosaic.version = 11 : i64} {
  func.func @_specaug_full_kernel(%arg0: i32, %arg1: i32, %arg2: i32, %arg3: memref<4xi32, #tpu.memory_space<smem>>, %arg4: memref<2x64x128xf32, #tpu.memory_space<vmem>>, %arg5: memref<2x64x128xf32, #tpu.memory_space<vmem>>) attributes {dimension_semantics = [#tpu.dimension_semantics<parallel>, #tpu.dimension_semantics<parallel>, #tpu.dimension_semantics<parallel>], iteration_bounds = array<i64: 1, 1, 1>, scalar_prefetch = 1 : i64, scratch_operands = 0 : i64, tpu.core_type = #tpu.core_type<tc>, window_params = [{transform_indices = @transform_0, window_bounds = array<i64: 2, 64, 128>}, {transform_indices = @transform_1, window_bounds = array<i64: 2, 64, 128>}]} {
    %c0 = arith.constant 0 : index
    %0 = memref.load %arg3[%c0] : memref<4xi32, #tpu.memory_space<smem>>
    %c1 = arith.constant 1 : index
    %1 = memref.load %arg3[%c1] : memref<4xi32, #tpu.memory_space<smem>>
    %c2 = arith.constant 2 : index
    %2 = memref.load %arg3[%c2] : memref<4xi32, #tpu.memory_space<smem>>
    %c3 = arith.constant 3 : index
    %3 = memref.load %arg3[%c3] : memref<4xi32, #tpu.memory_space<smem>>
    %c64_i32 = arith.constant 64 : i32
    %4 = arith.muli %arg1, %c64_i32 : i32
    %c128_i32 = arith.constant 128 : i32
    %5 = arith.muli %arg2, %c128_i32 : i32
    %6 = tpu.iota {dimensions = array<i32: 2>} : vector<1x1x128xi32>
    %7 = vector.broadcast %5 : i32 to vector<1x1x128xi32>
    %8 = arith.addi %6, %7 : vector<1x1x128xi32>
    %9 = tpu.iota {dimensions = array<i32: 1>} : vector<1x64x1xi32>
    %10 = vector.broadcast %4 : i32 to vector<1x64x1xi32>
    %11 = arith.addi %9, %10 : vector<1x64x1xi32>
    %12 = vector.broadcast %0 : i32 to vector<1x1x128xi32>
    %13 = arith.cmpi slt, %8, %12 : vector<1x1x128xi32>
    %14 = vector.broadcast %1 : i32 to vector<1x1x128xi32>
    %15 = arith.cmpi sge, %8, %14 : vector<1x1x128xi32>
    %16 = arith.ori %13, %15 : vector<1x1x128xi1>
    %17 = vector.broadcast %2 : i32 to vector<1x64x1xi32>
    %18 = arith.cmpi slt, %11, %17 : vector<1x64x1xi32>
    %19 = vector.broadcast %3 : i32 to vector<1x64x1xi32>
    %20 = arith.cmpi sge, %11, %19 : vector<1x64x1xi32>
    %21 = arith.ori %18, %20 : vector<1x64x1xi1>
    %22 = vector.broadcast %16 : vector<1x1x128xi1> to vector<1x64x128xi1>
    %23 = vector.broadcast %21 : vector<1x64x1xi1> to vector<1x64x128xi1>
    %24 = arith.andi %22, %23 : vector<1x64x128xi1>
    %c0_0 = arith.constant 0 : index
    %c0_1 = arith.constant 0 : index
    %c0_2 = arith.constant 0 : index
    %25 = vector.load %arg4[%c0_0, %c0_1, %c0_2] : memref<2x64x128xf32, #tpu.memory_space<vmem>>, vector<2x64x128xf32>
    %cst = arith.constant 0.000000e+00 : f32
    %26 = vector.shape_cast %24 : vector<1x64x128xi1> to vector<1x64x128xi1>
    %27 = vector.broadcast %26 : vector<1x64x128xi1> to vector<2x64x128xi1>
    %28 = vector.broadcast %cst : f32 to vector<2x64x128xf32>
    %29 = arith.select %27, %25, %28 : vector<2x64x128xi1>, vector<2x64x128xf32>
    %c0_3 = arith.constant 0 : index
    %c0_4 = arith.constant 0 : index
    %c0_5 = arith.constant 0 : index
    %30 = vector.load %arg5[%c0_3, %c0_4, %c0_5] : memref<2x64x128xf32, #tpu.memory_space<vmem>>, vector<2x64x128xf32>
    tpu.vector_store %arg5[%c0_3, %c0_4, %c0_5], %29 {strides = array<i32>} : memref<2x64x128xf32, #tpu.memory_space<vmem>>, vector<2x64x128xf32>,
    return
  }
  func.func @transform_0(%arg0: i32, %arg1: i32, %arg2: i32, %arg3: memref<4xi32, #tpu.memory_space<smem>>) -> (i32, i32, i32) {
    %c0_i32 = arith.constant 0 : i32
    return %arg0, %arg1, %arg2 : i32, i32, i32
  }
  func.func @transform_1(%arg0: i32, %arg1: i32, %arg2: i32, %arg3: memref<4xi32, #tpu.memory_space<smem>>) -> (i32, i32, i32) {
    %c0_i32 = arith.constant 0 : i32
    return %arg0, %arg1, %arg2 : i32, i32, i32
  }
}

</mosaic_0001>

<llo_original>
// kernel: spec_augment.1
$region0: #{spec_augment.1}
  #allocation0 [shape = 'u32[]', space=smem, size = 0x4, offset = 0x4, fixed_abs, tag = 'smem constant byte address 0x4 - core index']
  #allocation1 [shape = 'u32[72,128]{1,0:T(1,128)}', space=vmem, size = 0x9000, scoped, tag = 'internal scratch']
  #allocation2 [shape = 's32[1]{0}', space=sflag, size = 0x4, scoped, tag = 'scoped memory for spec_augment.1']
  #allocation3 [shape = 'u8[512]{0}', space=smem, size = 0x200, scoped, tag = 'prefetched SMEM operand 0']
  %s0 = inlined_call_operand.vmem [shape: s32[4], index: 0, kind: input, shape index: {}]
  %s1 = inlined_call_operand.vmem [shape: f32[2,64,128], index: 1, kind: input, shape index: {}]
  %s2 = inlined_call_operand.hbm [shape: f32[2,64,128], index: 2, kind: output, shape index: {}]
  %s3 = sld [smem:[#allocation0]]
  $region14: #{spec_augment.1} parent=0
    _
  %s5 = ssub.s32 1, %s3
  %s6 = scalar_select 0, %s5, %s3
  %s8 = sshll.u32 %s0, 4
  %s9 = int_to_ptr.vmem [resolvable:$true] %s8
  %11 = dma.vmem_to_smem %s9, 16, [#allocation3], [#allocation2]
  %13 = dma.done [#allocation2], 16
  %14 = sfence
  $region1: #{spec_augment.1} parent=0
    #allocation4 [shape = 'u8[65536]{0}', space=vmem, size = 0x10000, scoped, tag = 'output window, operand 0, single buffered']
    #allocation5 [shape = 's32[1]{0}', space=sflag, size = 0x4, scoped, tag = 'scoped memory for spec_augment.1']
    %15 = vsyncpa [#allocation5], 0
    // Predicated region
    $region2: #{spec_augment.1} parent=1 // pred_check
      _
    $region3: #{spec_augment.1} parent=1 // pred_check_branch
      %17 = sbr.rel (0) target = $region5
    $region4: #{spec_augment.1} parent=1 // pred_region
      _
    $region5: #{spec_augment.1} parent=1 // pred_fallthru
      _
    %s18 = sld [smem:[#allocation3]]
    %s19 = sld [smem:[#allocation3 + $0x1]]
    %s20 = sld [smem:[#allocation3 + $0x2]]
    %s21 = sld [smem:[#allocation3 + $0x3]]
    %s22 = smul.u32 0, 64
    %s23 = smul.u32 0, 128
    %v24 = vlaneseq
    %v25 = vand.u32 %v24, 127
    %v26 = vstv %s23
    %v27 = vadd.s32 %v25, %v26
    %v28 = vlaneseq
    %v29 = vshrl.u32 %v28, 7
    %v30 = vadd.s32 %v29, 8
    %v31 = vadd.s32 %v29, 16
    %v32 = vadd.s32 %v29, 24
    %v33 = vadd.s32 %v29, 32
    %v34 = vadd.s32 %v29, 40
    %v35 = vadd.s32 %v29, 48
    %v36 = vadd.s32 %v29, 56
    %v37 = vstv %s22
    %v38 = vadd.s32 %v29, %v37
    %v39 = vadd.s32 %v30, %v37
    %v40 = vadd.s32 %v31, %v37
    %v41 = vadd.s32 %v32, %v37
    %v42 = vadd.s32 %v33, %v37
    %v43 = vadd.s32 %v34, %v37
    %v44 = vadd.s32 %v35, %v37
    %v45 = vadd.s32 %v36, %v37
    %v46 = vstv %s18
    %vm47 = vcmp.lt.s32.totalorder %v27, %v46
    %v48 = vstv %s19
    %vm49 = vcmp.ge.s32.totalorder %v27, %v48
    %vm50 = vmor %vm47, %vm49
    %v51 = vstv %s20
    %vm52 = vcmp.lt.s32.totalorder %v38, %v51
    %vm53 = vcmp.lt.s32.totalorder %v39, %v51
    %vm54 = vcmp.lt.s32.totalorder %v40, %v51
    %vm55 = vcmp.lt.s32.totalorder %v41, %v51
    %vm56 = vcmp.lt.s32.totalorder %v42, %v51
    %vm57 = vcmp.lt.s32.totalorder %v43, %v51
    %vm58 = vcmp.lt.s32.totalorder %v44, %v51
    %vm59 = vcmp.lt.s32.totalorder %v45, %v51
    %v60 = vstv %s21
    %vm61 = vcmp.ge.s32.totalorder %v38, %v60
    %vm62 = vcmp.ge.s32.totalorder %v39, %v60
    %vm63 = vcmp.ge.s32.totalorder %v40, %v60
    %vm64 = vcmp.ge.s32.totalorder %v41, %v60
    %vm65 = vcmp.ge.s32.totalorder %v42, %v60
    %vm66 = vcmp.ge.s32.totalorder %v43, %v60
    %vm67 = vcmp.ge.s32.totalorder %v44, %v60
    %vm68 = vcmp.ge.s32.totalorder %v45, %v60
    %vm69 = vmor %vm52, %vm61
    %vm70 = vmor %vm53, %vm62
    %vm71 = vmor %vm54, %vm63
    %vm72 = vmor %vm55, %vm64
    %vm73 = vmor %vm56, %vm65
    %vm74 = vmor %vm57, %vm66
    %vm75 = vmor %vm58, %vm67
    %vm76 = vmor %vm59, %vm68
    %v77 = vsel %vm50, 1, 0
    %vm78 = vcmp.eq.s32.totalorder %v77, 1
    %v79 = vsel %vm69, 1, 0
    %v80 = vsel %vm70, 1, 0
    %v81 = vsel %vm71, 1, 0
    %v82 = vsel %vm72, 1, 0
    %v83 = vsel %vm73, 1, 0
    %v84 = vsel %vm74, 1, 0
    %v85 = vsel %vm75, 1, 0
    %v86 = vsel %vm76, 1, 0
    %vm87 = vcmp.eq.s32.totalorder %v79, 1
    %vm88 = vcmp.eq.s32.totalorder %v80, 1
    %vm89 = vcmp.eq.s32.totalorder %v81, 1
    %vm90 = vcmp.eq.s32.totalorder %v82, 1
    %vm91 = vcmp.eq.s32.totalorder %v83, 1
    %vm92 = vcmp.eq.s32.totalorder %v84, 1
    %vm93 = vcmp.eq.s32.totalorder %v85, 1
    %vm94 = vcmp.eq.s32.totalorder %v86, 1
    %vm95 = vmand %vm78, %vm87
    %vm96 = vmand %vm78, %vm88
    %vm97 = vmand %vm78, %vm89
    %vm98 = vmand %vm78, %vm90
    %vm99 = vmand %vm78, %vm91
    %vm100 = vmand %vm78, %vm92
    %vm101 = vmand %vm78, %vm93
    %vm102 = vmand %vm78, %vm94
    %v103 = vld [vmem:[%s1] sm:$0xff]
    %v104 = vld [vmem:[%s1 + $0x8] sm:$0xff]
    %v105 = vld [vmem:[%s1 + $0x10] sm:$0xff]
    %v106 = vld [vmem:[%s1 + $0x18] sm:$0xff]
    %v107 = vld [vmem:[%s1 + $0x20] sm:$0xff]
    %v108 = vld [vmem:[%s1 + $0x28] sm:$0xff]
    %v109 = vld [vmem:[%s1 + $0x30] sm:$0xff]
    %v110 = vld [vmem:[%s1 + $0x38] sm:$0xff]
    %v111 = vld [vmem:[%s1 + $0x40] sm:$0xff]
    %v112 = vld [vmem:[%s1 + $0x48] sm:$0xff]
    %v113 = vld [vmem:[%s1 + $0x50] sm:$0xff]
    %v114 = vld [vmem:[%s1 + $0x58] sm:$0xff]
    %v115 = vld [vmem:[%s1 + $0x60] sm:$0xff]
    %v116 = vld [vmem:[%s1 + $0x68] sm:$0xff]
    %v117 = vld [vmem:[%s1 + $0x70] sm:$0xff]
    %v118 = vld [vmem:[%s1 + $0x78] sm:$0xff]
    %v119 = vsel %vm95, 1, 0
    %v120 = vsel %vm96, 1, 0
    %v121 = vsel %vm97, 1, 0
    %v122 = vsel %vm98, 1, 0
    %v123 = vsel %vm99, 1, 0
    %v124 = vsel %vm100, 1, 0
    %v125 = vsel %vm101, 1, 0
    %v126 = vsel %vm102, 1, 0
    %vm127 = vcmp.eq.s32.totalorder %v119, 1
    %vm128 = vcmp.eq.s32.totalorder %v120, 1
    %vm129 = vcmp.eq.s32.totalorder %v121, 1
    %vm130 = vcmp.eq.s32.totalorder %v122, 1
    %vm131 = vcmp.eq.s32.totalorder %v123, 1
    %vm132 = vcmp.eq.s32.totalorder %v124, 1
    %vm133 = vcmp.eq.s32.totalorder %v125, 1
    %vm134 = vcmp.eq.s32.totalorder %v126, 1
    %v135 = vsel %vm127, %v103, 0.0
    %v136 = vsel %vm128, %v104, 0.0
    %v137 = vsel %vm129, %v105, 0.0
    %v138 = vsel %vm130, %v106, 0.0
    %v139 = vsel %vm131, %v107, 0.0
    %v140 = vsel %vm132, %v108, 0.0
    %v141 = vsel %vm133, %v109, 0.0
    %v142 = vsel %vm134, %v110, 0.0
    %v143 = vsel %vm127, %v111, 0.0
    %v144 = vsel %vm128, %v112, 0.0
    %v145 = vsel %vm129, %v113, 0.0
    %v146 = vsel %vm130, %v114, 0.0
    %v147 = vsel %vm131, %v115, 0.0
    %v148 = vsel %vm132, %v116, 0.0
    %v149 = vsel %vm133, %v117, 0.0
    %v150 = vsel %vm134, %v118, 0.0
    %151 = vst [vmem:[#allocation4] sm:$0xff] %v135
    %152 = vst [vmem:[#allocation4 + $0x8] sm:$0xff] %v136
    %153 = vst [vmem:[#allocation4 + $0x10] sm:$0xff] %v137
    %154 = vst [vmem:[#allocation4 + $0x18] sm:$0xff] %v138
    %155 = vst [vmem:[#allocation4 + $0x20] sm:$0xff] %v139
    %156 = vst [vmem:[#allocation4 + $0x28] sm:$0xff] %v140
    %157 = vst [vmem:[#allocation4 + $0x30] sm:$0xff] %v141
    %158 = vst [vmem:[#allocation4 + $0x38] sm:$0xff] %v142
    %159 = vst [vmem:[#allocation4 + $0x40] sm:$0xff] %v143
    %160 = vst [vmem:[#allocation4 + $0x48] sm:$0xff] %v144
    %161 = vst [vmem:[#allocation4 + $0x50] sm:$0xff] %v145
    %162 = vst [vmem:[#allocation4 + $0x58] sm:$0xff] %v146
    %163 = vst [vmem:[#allocation4 + $0x60] sm:$0xff] %v147
    %164 = vst [vmem:[#allocation4 + $0x68] sm:$0xff] %v148
    %165 = vst [vmem:[#allocation4 + $0x70] sm:$0xff] %v149
    %166 = vst [vmem:[#allocation4 + $0x78] sm:$0xff] %v150
    // Predicated region
    $region6: #{spec_augment.1} parent=1 // pred_check
      _
    $region7: #{spec_augment.1} parent=1 // pred_check_branch
      %168 = sbr.rel (0) target = $region9
    $region8: #{spec_augment.1} parent=1 // pred_region
      %170 = vsyncadd [#allocation5], 0
      %s171 = sshll.u32 [#allocation4], 4
      %s172 = int_to_ptr.vmem [resolvable:$true] %s171
      %s173 = sshll.u32 %s2, 4
      %s174 = int_to_ptr.hbm [resolvable:$true] %s173
      %179 = dma.vmem_to_hbm [thread:$0]  %s172, 2048, %s174, [#allocation5], 128, 128, 8
    $region9: #{spec_augment.1} parent=1 // pred_fallthru
      _
    // Predicated region
    $region10: #{spec_augment.1} parent=1 // pred_check
      _
    $region11: #{spec_augment.1} parent=1 // pred_check_branch
      %181 = sbr.rel (0) target = $region13
    $region12: #{spec_augment.1} parent=1 // pred_region
      %183 = dma.done [#allocation5], 2048
    $region13: #{spec_augment.1} parent=1 // pred_fallthru
      _
    %184 = vsyncpa [#allocation5], 1

</llo_original>
